<compile_context>
chip_gen: v6e
topology: v6e:2x2x1
jax: 0.10.0
libtpu: 0.0.40
codegen_flags: <defaults>
</compile_context>

<pallas_src>
import math

import jax
import jax.numpy as jnp
from jax.experimental import pallas as pl
from jax.experimental.pallas import tpu as pltpu


def _round_up(x, m):
    return ((x + m - 1) // m) * m


def _mlp_kernel(x_ref, w1_ref, b1_ref, w2_ref, b2_ref, w3r_ref, b3_ref, o_ref):
    # NOTE: for very large tiles (tm >= 512, D >= 2048) stage h1/h2 in explicit
    # VMEM scratch (scratch_shapes) and single-buffer the resident weights
    # (pipeline_mode=pl.Buffered(1)) to stay inside v7x's 64 MiB VMEM.
    x = x_ref[...]                                                  # (tm, Dp) bf16

    # Layer 1: (tm, Dp) @ (Dp, Hp), f32 accumulation on the MXU; bias+ReLU on VPU.
    h1 = jnp.dot(x, w1_ref[...], preferred_element_type=jnp.float32) + b1_ref[...]
    h1 = jnp.maximum(h1, 0.0).astype(jnp.bfloat16)

    # Layer 2: (tm, Hp) @ (Hp, Dp).
    h2 = jnp.dot(h1, w2_ref[...], preferred_element_type=jnp.float32) + b2_ref[...]
    h2 = jnp.maximum(h2, 0.0).astype(jnp.bfloat16)

    # Layer 3 (Dp -> 1), lane-dense: W3 is stored as rows (8, Dp) with only row
    # 0 live; contract it with h2 over the feature axis -> (8, tm), keep row 0.
    # The result lands with batch on the lane axis so the output store is a
    # full-width (1, tm) vst instead of a masked single-lane (tm, 1) column.
    logits8 = jax.lax.dot_general(
        w3r_ref[...], h2,
        dimension_numbers=(((1,), (1,)), ((), ())),
        preferred_element_type=jnp.float32)                         # (8, tm)
    logits = logits8[0:1, :] + b3_ref[...]                          # (1, tm)
    o_ref[...] = jax.nn.sigmoid(logits).astype(o_ref.dtype)


def mlp_layer_forward(x, params, *, tm=128):
    """MLPLayer forward (Linear -> ReLU -> Linear -> ReLU -> Linear -> Sigmoid -> flatten).

    x: (N, D) float32. Returns (N,) float32 (out_dim == 1).
    tm: batch rows per grid step; must be a multiple of 128 (128 for v5e,
        256-512 for v6e/v7x at large N).
    """
    w1, b1, w2, b2, w3, b3 = params
    N, D = x.shape
    H = w1.shape[1]                       # 2*D
    # TODO(synk): kernel specializes out_dim == 1 (the module default used by
    # .view(-1)); general out_dim would need a (tm, out_dim) output layout.
    assert w1.shape == (D, H) and w2.shape == (H, D) and w3.shape == (D, 1)
    assert tm % 128 == 0

    # Pad feature dims to the 128-lane width, batch to the tile size.
    Dp = _round_up(D, 128)
    Hp = _round_up(H, 128)
    if N <= tm:
        tm = _round_up(N, 8)              # single tile for tiny batches
    Np = _round_up(N, tm)
    grid = (Np // tm,)

    f32, bf16 = jnp.float32, jnp.bfloat16
    x_p = jnp.pad(x, ((0, Np - N), (0, Dp - D))).astype(bf16)
    w1_p = jnp.pad(w1, ((0, Dp - D), (0, Hp - H))).astype(bf16)
    b1_p = jnp.pad(b1, ((0, 0), (0, Hp - H))).astype(f32)
    w2_p = jnp.pad(w2, ((0, Hp - H), (0, Dp - D))).astype(bf16)
    b2_p = jnp.pad(b2, ((0, 0), (0, Dp - D))).astype(f32)
    # W3 stored as rows (out, in), padded to 8 sublanes so the transposed
    # contraction in the kernel uses well-formed (8, 128)-aligned tiles.
    w3r_p = jnp.pad(w3.T, ((0, 7), (0, Dp - D))).astype(bf16)       # (8, Dp)
    b3_p = b3.astype(f32)                                           # (1, 1)

    const = lambda i: (0, 0)
    out = pl.pallas_call(
        _mlp_kernel,
        out_shape=jax.ShapeDtypeStruct((1, Np), jnp.float32),
        grid_spec=pltpu.PrefetchScalarGridSpec(
            num_scalar_prefetch=0,
            grid=grid,
            in_specs=[
                pl.BlockSpec((tm, Dp), lambda i: (i, 0)),   # x tile
                pl.BlockSpec((Dp, Hp), const),              # W1 (resident)
                pl.BlockSpec((1, Hp), const),               # b1
                pl.BlockSpec((Hp, Dp), const),              # W2 (resident)
                pl.BlockSpec((1, Dp), const),               # b2
                pl.BlockSpec((8, Dp), const),               # W3 rows
                pl.BlockSpec((1, 1), const),                # b3
            ],
            out_specs=pl.BlockSpec((1, tm), lambda i: (0, i)),  # lane-dense row
        ),
        compiler_params=pltpu.CompilerParams(
            dimension_semantics=("parallel",),          # v7x: 2 TCs split batch
            vmem_limit_bytes=64 * 1024 * 1024,          # headroom for big tiles
        ),
    )(x_p, w1_p, b1_p, w2_p, b2_p, w3r_p, b3_p)

    return out.reshape(-1)[:N]    # .view(-1)


def init_mlp_params(key, in_dim, out_dim=1):
    """nn.Linear + xavier_uniform_ on weights; weights stored as (in, out)."""
    dims = [(in_dim, in_dim * 2), (in_dim * 2, in_dim), (in_dim, out_dim)]
    params = []
    for (fan_in, fan_out) in dims:
        key, kw, kb = jax.random.split(key, 3)
        a = math.sqrt(6.0 / (fan_in + fan_out))                # xavier_uniform_
        w = jax.random.uniform(kw, (fan_in, fan_out), jnp.float32, -a, a)
        bb = 1.0 / math.sqrt(fan_in)                           # default bias init
        b = jax.random.uniform(kb, (1, fan_out), jnp.float32, -bb, bb)
        params += [w, b]
    return tuple(params)


def mlp_layer_reference(x, params):
    w1, b1, w2, b2, w3, b3 = params
    h1 = jnp.maximum(x @ w1 + b1, 0.0)
    h2 = jnp.maximum(h1 @ w2 + b2, 0.0)
    return jax.nn.sigmoid(h2 @ w3 + b3).reshape(-1)


if __name__ == "__main__":
    key = jax.random.PRNGKey(0)
    in_dim = 32
    N = 256           # small, but two 128-row tiles -> exercises grid + padding

    key, kx, kp = jax.random.split(key, 3)
    x = jax.random.normal(kx, (N, in_dim), jnp.float32)
    params = init_mlp_params(kp, in_dim, out_dim=1)

    out = mlp_layer_forward(x, params, tm=128)
    out = jax.block_until_ready(out)

    ref = mlp_layer_reference(x, params)
    assert out.shape == (N,)
    # bf16 matmul operands with f32 accumulation -> loosened tolerance.
    assert jnp.allclose(out, ref, atol=2e-2, rtol=2e-2), "mismatch vs reference"

    print("KERNEL_OK")
</pallas_src>

<mosaic_0001>
module attributes {stable_mosaic.version = 11 : i64} {
  func.func @_mlp_kernel(%arg0: i32, %arg1: memref<128x128xbf16, #tpu.memory_space<vmem>>, %arg2: memref<128x128xbf16, #tpu.memory_space<vmem>>, %arg3: memref<1x128xf32, #tpu.memory_space<vmem>>, %arg4: memref<128x128xbf16, #tpu.memory_space<vmem>>, %arg5: memref<1x128xf32, #tpu.memory_space<vmem>>, %arg6: memref<8x128xbf16, #tpu.memory_space<vmem>>, %arg7: memref<1x1xf32, #tpu.memory_space<vmem>>, %arg8: memref<1x128xf32, #tpu.memory_space<vmem>>) attributes {dimension_semantics = [#tpu.dimension_semantics<parallel>], iteration_bounds = array<i64: 2>, scalar_prefetch = 0 : i64, scratch_operands = 0 : i64, tpu.core_type = #tpu.core_type<tc>, window_params = [{transform_indices = @transform_0, window_bounds = array<i64: 128, 128>}, {pipeline_mode = #tpu.pipeline_mode<synchronous>, transform_indices = @transform_1, window_bounds = array<i64: 128, 128>}, {pipeline_mode = #tpu.pipeline_mode<synchronous>, transform_indices = @transform_2, window_bounds = array<i64: 1, 128>}, {pipeline_mode = #tpu.pipeline_mode<synchronous>, transform_indices = @transform_3, window_bounds = array<i64: 128, 128>}, {pipeline_mode = #tpu.pipeline_mode<synchronous>, transform_indices = @transform_4, window_bounds = array<i64: 1, 128>}, {pipeline_mode = #tpu.pipeline_mode<synchronous>, transform_indices = @transform_5, window_bounds = array<i64: 8, 128>}, {pipeline_mode = #tpu.pipeline_mode<synchronous>, transform_indices = @transform_6, window_bounds = array<i64: 1, 1>}, {transform_indices = @transform_7, window_bounds = array<i64: 1, 128>}]} {
    %c0 = arith.constant 0 : index
    %c0_0 = arith.constant 0 : index
    %0 = vector.load %arg1[%c0, %c0_0] : memref<128x128xbf16, #tpu.memory_space<vmem>>, vector<128x128xbf16>
    %c0_1 = arith.constant 0 : index
    %c0_2 = arith.constant 0 : index
    %1 = vector.load %arg2[%c0_1, %c0_2] : memref<128x128xbf16, #tpu.memory_space<vmem>>, vector<128x128xbf16>
    %cst = arith.constant dense<0.000000e+00> : vector<128x128xf32>
    %2 = tpu.matmul %0, %1, %cst {dimension_numbers = #tpu.dot_dimension_numbers<[1], [0], [0], [1], [0, 0, 1, 1], [], []>} : vector<128x128xbf16>, vector<128x128xbf16>, vector<128x128xf32> -> vector<128x128xf32>
    %c0_3 = arith.constant 0 : index
    %c0_4 = arith.constant 0 : index
    %3 = vector.load %arg3[%c0_3, %c0_4] : memref<1x128xf32, #tpu.memory_space<vmem>>, vector<1x128xf32>
    %4 = vector.broadcast %3 : vector<1x128xf32> to vector<128x128xf32>
    %5 = arith.addf %2, %4 : vector<128x128xf32>
    %cst_5 = arith.constant 0.000000e+00 : f32
    %6 = vector.broadcast %cst_5 : f32 to vector<128x128xf32>
    %7 = arith.maximumf %5, %6 : vector<128x128xf32>
    %8 = arith.truncf %7 : vector<128x128xf32> to vector<128x128xbf16>
    %c0_6 = arith.constant 0 : index
    %c0_7 = arith.constant 0 : index
    %9 = vector.load %arg4[%c0_6, %c0_7] : memref<128x128xbf16, #tpu.memory_space<vmem>>, vector<128x128xbf16>
    %cst_8 = arith.constant dense<0.000000e+00> : vector<128x128xf32>
    %10 = tpu.matmul %8, %9, %cst_8 {dimension_numbers = #tpu.dot_dimension_numbers<[1], [0], [0], [1], [0, 0, 1, 1], [], []>} : vector<128x128xbf16>, vector<128x128xbf16>, vector<128x128xf32> -> vector<128x128xf32>
    %c0_9 = arith.constant 0 : index
    %c0_10 = arith.constant 0 : index
    %11 = vector.load %arg5[%c0_9, %c0_10] : memref<1x128xf32, #tpu.memory_space<vmem>>, vector<1x128xf32>
    %12 = vector.broadcast %11 : vector<1x128xf32> to vector<128x128xf32>
    %13 = arith.addf %10, %12 : vector<128x128xf32>
    %cst_11 = arith.constant 0.000000e+00 : f32
    %14 = vector.broadcast %cst_11 : f32 to vector<128x128xf32>
    %15 = arith.maximumf %13, %14 : vector<128x128xf32>
    %16 = arith.truncf %15 : vector<128x128xf32> to vector<128x128xbf16>
    %c0_12 = arith.constant 0 : index
    %c0_13 = arith.constant 0 : index
    %17 = vector.load %arg6[%c0_12, %c0_13] : memref<8x128xbf16, #tpu.memory_space<vmem>>, vector<8x128xbf16>
    %cst_14 = arith.constant dense<0.000000e+00> : vector<8x128xf32>
    %18 = tpu.matmul %17, %16, %cst_14 {dimension_numbers = #tpu.dot_dimension_numbers<[1], [1], [0], [0], [0, 0, 1, 0], [], []>} : vector<8x128xbf16>, vector<128x128xbf16>, vector<8x128xf32> -> vector<8x128xf32>
    %19 = vector.extract_strided_slice %18 {offsets = [0, 0], sizes = [1, 128], strides = [1, 1]} : vector<8x128xf32> to vector<1x128xf32>
    %c0_15 = arith.constant 0 : index
    %c0_16 = arith.constant 0 : index
    %20 = vector.load %arg7[%c0_15, %c0_16] : memref<1x1xf32, #tpu.memory_space<vmem>>, vector<1x1xf32>
    %21 = vector.broadcast %20 : vector<1x1xf32> to vector<1x128xf32>
    %22 = arith.addf %19, %21 : vector<1x128xf32>
    %23 = arith.negf %22 : vector<1x128xf32>
    %24 = math.exp %23 : vector<1x128xf32>
    %cst_17 = arith.constant 1.000000e+00 : f32
    %25 = vector.broadcast %cst_17 : f32 to vector<1x128xf32>
    %26 = arith.addf %25, %24 : vector<1x128xf32>
    %27 = arith.divf %25, %26 : vector<1x128xf32>
    %c0_18 = arith.constant 0 : index
    %c0_19 = arith.constant 0 : index
    %28 = vector.load %arg8[%c0_18, %c0_19] : memref<1x128xf32, #tpu.memory_space<vmem>>, vector<1x128xf32>
    tpu.vector_store %arg8[%c0_18, %c0_19], %27 {strides = array<i32>} : memref<1x128xf32, #tpu.memory_space<vmem>>, vector<1x128xf32>,
    return
  }
  func.func @transform_0(%arg0: i32) -> (i32, i32) {
    %c0_i32 = arith.constant 0 : i32
    %c0_i32_0 = arith.constant 0 : i32
    return %arg0, %c0_i32 : i32, i32
  }
  func.func @transform_1(%arg0: i32) -> (i32, i32) {
    %c0_i32 = arith.constant 0 : i32
    %c0_i32_0 = arith.constant 0 : i32
    %c0_i32_1 = arith.constant 0 : i32
    return %c0_i32, %c0_i32_0 : i32, i32
  }
  func.func @transform_2(%arg0: i32) -> (i32, i32) {
    %c0_i32 = arith.constant 0 : i32
    %c0_i32_0 = arith.constant 0 : i32
    %c0_i32_1 = arith.constant 0 : i32
    return %c0_i32, %c0_i32_0 : i32, i32
  }
  func.func @transform_3(%arg0: i32) -> (i32, i32) {
    %c0_i32 = arith.constant 0 : i32
    %c0_i32_0 = arith.constant 0 : i32
    %c0_i32_1 = arith.constant 0 : i32
    return %c0_i32, %c0_i32_0 : i32, i32
  }
  func.func @transform_4(%arg0: i32) -> (i32, i32) {
    %c0_i32 = arith.constant 0 : i32
    %c0_i32_0 = arith.constant 0 : i32
    %c0_i32_1 = arith.constant 0 : i32
    return %c0_i32, %c0_i32_0 : i32, i32
  }
  func.func @transform_5(%arg0: i32) -> (i32, i32) {
    %c0_i32 = arith.constant 0 : i32
    %c0_i32_0 = arith.constant 0 : i32
    %c0_i32_1 = arith.constant 0 : i32
    return %c0_i32, %c0_i32_0 : i32, i32
  }
  func.func @transform_6(%arg0: i32) -> (i32, i32) {
    %c0_i32 = arith.constant 0 : i32
    %c0_i32_0 = arith.constant 0 : i32
    %c0_i32_1 = arith.constant 0 : i32
    return %c0_i32, %c0_i32_0 : i32, i32
  }
  func.func @transform_7(%arg0: i32) -> (i32, i32) {
    %c0_i32 = arith.constant 0 : i32
    %c0_i32_0 = arith.constant 0 : i32
    return %c0_i32, %arg0 : i32, i32
  }
}

</mosaic_0001>

<llo_original>
// kernel: tpu_custom_call.1
$region0: #{tpu_custom_call.1}
  #allocation0 [shape = 'u32[]', space=smem, size = 0x4, offset = 0x4, fixed_abs, tag = 'smem constant byte address 0x4 - core index']
  #allocation1 [shape = 'u32[144,128]{1,0:T(1,128)}', space=vmem, size = 0x12000, scoped, tag = 'internal scratch']
  #allocation2 [shape = 'f32[1,1]{1,0:T(1,128)S(1)}', space=vmem, size = 0x200, scoped, tag = 'scoped memory for tpu_custom_call.1']
  %s0 = inlined_call_operand.hbm [shape: bf16[256,128], index: 0, kind: input, shape index: {}]
  %s1 = inlined_call_operand.hbm [shape: bf16[128,128], index: 1, kind: input, shape index: {}]
  %s2 = inlined_call_operand.vmem [shape: f32[1,128], index: 2, kind: input, shape index: {}]
  %s3 = inlined_call_operand.hbm [shape: bf16[128,128], index: 3, kind: input, shape index: {}]
  %s4 = inlined_call_operand.vmem [shape: f32[1,128], index: 4, kind: input, shape index: {}]
  %s5 = inlined_call_operand.vmem [shape: bf16[8,128], index: 5, kind: input, shape index: {}]
  %s6 = inlined_call_operand.<no memory space> [shape: f32[1,1], index: 6, kind: input, shape index: {}]
  %s7 = inlined_call_operand.hbm [shape: f32[1,256], index: 7, kind: output, shape index: {}]
  %s8 = sld [smem:[#allocation0]]
  $region73: #{tpu_custom_call.1} parent=0
    _
  %s10 = ssub.s32 1, %s8
  %s11 = scalar_select 0, %s10, %s8
  %v12 = vstv %s6
  %13 = vst [vmem:[#allocation2] sm:$0x1] %v12
  $region1: #{tpu_custom_call.1} parent=0
    #allocation3 [shape = 'u8[65536]{0}', space=vmem, size = 0x10000, scoped, tag = 'input window, operand 0']
    #allocation4 [shape = 's32[2]{0}', space=sflag, size = 0x8, scoped, tag = 'scoped memory for tpu_custom_call.1']
    #allocation5 [shape = 's32[2]{0}', space=sflag, size = 0x8, scoped, tag = 'scoped memory for tpu_custom_call.1']
    #allocation6 [shape = 'u8[32768]{0}', space=vmem, size = 0x8000, scoped, tag = 'input window, operand 1, single buffered']
    #allocation7 [shape = 's32[1]{0}', space=sflag, size = 0x4, scoped, tag = 'scoped memory for tpu_custom_call.1']
    #allocation8 [shape = 'u8[32768]{0}', space=vmem, size = 0x8000, scoped, tag = 'input window, operand 3, single buffered']
    #allocation9 [shape = 'u8[1024]{0}', space=vmem, size = 0x400, scoped, tag = 'output window, operand 0']
    %14 = vsyncpa [#allocation4], 0
    %s15 = scalar_lea.sflag [#allocation4], 1
    %16 = vsyncpa %s15, 0
    %17 = vsyncpa [#allocation7], 0
    %18 = vsyncpa [#allocation5], 0
    %s19 = scalar_lea.sflag [#allocation5], 1
    %20 = vsyncpa %s19, 0
    loop: start=0, step=1, limit=4
    $region2: #{tpu_custom_call.1} parent=1 // loop_pre_header
      _
    $region3: #{tpu_custom_call.1} parent=1 // loop_header
      %s22 = sphi 0, %s26
      %p23 = scmp.ge.s32.totalorder %s22, 4
      %s32 = sphi 0, %s34
      %s35 = sphi 0, %s32
      %s36 = sphi 0, %s35
      %s52 = sphi 0, %s36
      %s56 = sphi 0, %s56
      %s58 = sphi 0, %s56
      %s59 = sphi 0, %s58
      %s73 = sphi 0, %s59
      %s77 = sphi 0, %s77
      %s79 = sphi 0, %s77
      %s80 = sphi 0, %s79
      %s94 = sphi 0, %s80
      %s98 = sphi 0, %s98
      %s100 = sphi 0, %s98
      %s101 = sphi 0, %s100
      %s115 = sphi 0, %s101
      %s119 = sphi 0, %s119
      %s121 = sphi 0, %s119
      %s122 = sphi 0, %s121
      %s136 = sphi 0, %s122
      %s140 = sphi 0, %s140
      %s142 = sphi 0, %s140
      %s143 = sphi 0, %s142
      %s157 = sphi 0, %s143
      %s161 = sphi 0, %s161
      %s163 = sphi 0, %s161
      %s164 = sphi 0, %s163
      %s178 = sphi 0, %s164
      %s184 = sphi 0, %s186
      %s187 = sphi 0, %s184
      %s188 = sphi 0, %s187
      %s204 = sphi 0, %s188
    $region4: #{tpu_custom_call.1} parent=1 // loop_header_branch
      %25 = sbr.rel (%p23) target = $region8
    $region5: #{tpu_custom_call.1} parent=1 // loop_body
      %s27 = ssub.s32 %s22, 1
      %s28 = ssub.s32 %s22, 2
      %s29 = sadd.s32 %s22, 1
      %s30 = ssub.s32 %s22, %s29
      %p31 = scmp.eq.s32.totalorder %s30, 0
      %s33 = sadd.s32 %s32, 1
      %s34 = scalar_select %p31, %s32, %s33
      %p37 = pneg %p31
      %p38 = scmp.eq.s32.totalorder %s22, 1
      %p39 = por %p37, %p38
      %p40 = scmp.ne.s32.totalorder %s32, %s35
      %p41 = scmp.eq.s32.totalorder %s22, 0
      %p42 = por %p40, %p41
      %p43 = scmp.ne.s32.totalorder %s32, %s35
      %p44 = scmp.eq.s32.totalorder %s27, 1
      %p45 = por %p43, %p44
      %p46 = scmp.ne.s32.totalorder %s35, %s36
      %p47 = scmp.eq.s32.totalorder %s27, 0
      %p48 = por %p46, %p47
      %p49 = scmp.ne.s32.totalorder %s35, %s36
      %p50 = scmp.eq.s32.totalorder %s28, 1
      %p51 = por %p49, %p50
      %p53 = scmp.ne.s32.totalorder %s36, %s52
      %p54 = scmp.eq.s32.totalorder %s28, 0
      %p55 = por %p53, %p54
      %s57 = sadd.s32 %s56, 1
      %p60 = scmp.eq.s32.totalorder %s22, 1
      %p61 = scmp.ne.s32.totalorder %s56, %s58
      %p62 = scmp.eq.s32.totalorder %s22, 0
      %p63 = por %p61, %p62
      %p64 = scmp.ne.s32.totalorder %s56, %s58
      %p65 = scmp.eq.s32.totalorder %s27, 1
      %p66 = por %p64, %p65
      %p67 = scmp.ne.s32.totalorder %s58, %s59
      %p68 = scmp.eq.s32.totalorder %s27, 0
      %p69 = por %p67, %p68
      %p70 = scmp.ne.s32.totalorder %s58, %s59
      %p71 = scmp.eq.s32.totalorder %s28, 1
      %p72 = por %p70, %p71
      %p74 = scmp.ne.s32.totalorder %s59, %s73
      %p75 = scmp.eq.s32.totalorder %s28, 0
      %p76 = por %p74, %p75
      %s78 = sadd.s32 %s77, 1
      %p81 = scmp.eq.s32.totalorder %s22, 1
      %p82 = scmp.ne.s32.totalorder %s77, %s79
      %p83 = scmp.eq.s32.totalorder %s22, 0
      %p84 = por %p82, %p83
      %p85 = scmp.ne.s32.totalorder %s77, %s79
      %p86 = scmp.eq.s32.totalorder %s27, 1
      %p87 = por %p85, %p86
      %p88 = scmp.ne.s32.totalorder %s79, %s80
      %p89 = scmp.eq.s32.totalorder %s27, 0
      %p90 = por %p88, %p89
      %p91 = scmp.ne.s32.totalorder %s79, %s80
      %p92 = scmp.eq.s32.totalorder %s28, 1
      %p93 = por %p91, %p92
      %p95 = scmp.ne.s32.totalorder %s80, %s94
      %p96 = scmp.eq.s32.totalorder %s28, 0
      %p97 = por %p95, %p96
      %s99 = sadd.s32 %s98, 1
      %p102 = scmp.eq.s32.totalorder %s22, 1
      %p103 = scmp.ne.s32.totalorder %s98, %s100
      %p104 = scmp.eq.s32.totalorder %s22, 0
      %p105 = por %p103, %p104
      %p106 = scmp.ne.s32.totalorder %s98, %s100
      %p107 = scmp.eq.s32.totalorder %s27, 1
      %p108 = por %p106, %p107
      %p109 = scmp.ne.s32.totalorder %s100, %s101
      %p110 = scmp.eq.s32.totalorder %s27, 0
      %p111 = por %p109, %p110
      %p112 = scmp.ne.s32.totalorder %s100, %s101
      %p113 = scmp.eq.s32.totalorder %s28, 1
      %p114 = por %p112, %p113
      %p116 = scmp.ne.s32.totalorder %s101, %s115
      %p117 = scmp.eq.s32.totalorder %s28, 0
      %p118 = por %p116, %p117
      %s120 = sadd.s32 %s119, 1
      %p123 = scmp.eq.s32.totalorder %s22, 1
      %p124 = scmp.ne.s32.totalorder %s119, %s121
      %p125 = scmp.eq.s32.totalorder %s22, 0
      %p126 = por %p124, %p125
      %p127 = scmp.ne.s32.totalorder %s119, %s121
      %p128 = scmp.eq.s32.totalorder %s27, 1
      %p129 = por %p127, %p128
      %p130 = scmp.ne.s32.totalorder %s121, %s122
      %p131 = scmp.eq.s32.totalorder %s27, 0
      %p132 = por %p130, %p131
      %p133 = scmp.ne.s32.totalorder %s121, %s122
      %p134 = scmp.eq.s32.totalorder %s28, 1
      %p135 = por %p133, %p134
      %p137 = scmp.ne.s32.totalorder %s122, %s136
      %p138 = scmp.eq.s32.totalorder %s28, 0
      %p139 = por %p137, %p138
      %s141 = sadd.s32 %s140, 1
      %p144 = scmp.eq.s32.totalorder %s22, 1
      %p145 = scmp.ne.s32.totalorder %s140, %s142
      %p146 = scmp.eq.s32.totalorder %s22, 0
      %p147 = por %p145, %p146
      %p148 = scmp.ne.s32.totalorder %s140, %s142
      %p149 = scmp.eq.s32.totalorder %s27, 1
      %p150 = por %p148, %p149
      %p151 = scmp.ne.s32.totalorder %s142, %s143
      %p152 = scmp.eq.s32.totalorder %s27, 0
      %p153 = por %p151, %p152
      %p154 = scmp.ne.s32.totalorder %s142, %s143
      %p155 = scmp.eq.s32.totalorder %s28, 1
      %p156 = por %p154, %p155
      %p158 = scmp.ne.s32.totalorder %s143, %s157
      %p159 = scmp.eq.s32.totalorder %s28, 0
      %p160 = por %p158, %p159
      %s162 = sadd.s32 %s161, 1
      %p165 = scmp.eq.s32.totalorder %s22, 1
      %p166 = scmp.ne.s32.totalorder %s161, %s163
      %p167 = scmp.eq.s32.totalorder %s22, 0
      %p168 = por %p166, %p167
      %p169 = scmp.ne.s32.totalorder %s161, %s163
      %p170 = scmp.eq.s32.totalorder %s27, 1
      %p171 = por %p169, %p170
      %p172 = scmp.ne.s32.totalorder %s163, %s164
      %p173 = scmp.eq.s32.totalorder %s27, 0
      %p174 = por %p172, %p173
      %p175 = scmp.ne.s32.totalorder %s163, %s164
      %p176 = scmp.eq.s32.totalorder %s28, 1
      %p177 = por %p175, %p176
      %p179 = scmp.ne.s32.totalorder %s164, %s178
      %p180 = scmp.eq.s32.totalorder %s28, 0
      %p181 = por %p179, %p180
      %s182 = ssub.s32 %s22, %s29
      %p183 = scmp.eq.s32.totalorder %s182, 0
      %s185 = sadd.s32 %s184, 1
      %s186 = scalar_select %p183, %s184, %s185
      %p189 = pneg %p183
      %p190 = scmp.eq.s32.totalorder %s22, 1
      %p191 = por %p189, %p190
      %p192 = scmp.ne.s32.totalorder %s184, %s187
      %p193 = scmp.eq.s32.totalorder %s22, 0
      %p194 = por %p192, %p193
      %p195 = scmp.ne.s32.totalorder %s184, %s187
      %p196 = scmp.eq.s32.totalorder %s27, 1
      %p197 = por %p195, %p196
      %p198 = scmp.ne.s32.totalorder %s187, %s188
      %p199 = scmp.eq.s32.totalorder %s27, 0
      %p200 = por %p198, %p199
      %p201 = scmp.ne.s32.totalorder %s187, %s188
      %p202 = scmp.eq.s32.totalorder %s28, 1
      %p203 = por %p201, %p202
      %p205 = scmp.ne.s32.totalorder %s188, %s204
      %p206 = scmp.eq.s32.totalorder %s28, 0
      %p207 = por %p205, %p206
      %p208 = scmp.le.s32.totalorder 1, %s22
      %p209 = scmp.lt.s32.totalorder %s22, 3
      %p210 = pnand %p208, %p209
      %p211 = pneg %p210
      // Predicated region
      $region9: #{tpu_custom_call.1} parent=5 // pred_check
        _
      $region10: #{tpu_custom_call.1} parent=5 // pred_check_branch
        %213 = sbr.rel (%p210) target = $region12
      $region11: #{tpu_custom_call.1} parent=5 // pred_region
        %s214 = ssub.s32 %s22, 1
        // Predicated region
        $region13: #{tpu_custom_call.1} parent=11 // pred_check
          %p215 = pneg %p69
        $region14: #{tpu_custom_call.1} parent=11 // pred_check_branch
          %217 = sbr.rel (%p215) target = $region16
        $region15: #{tpu_custom_call.1} parent=11 // pred_region
          %s219 = ssub.s32 1024, 1024
          %220 = vsyncadd [#allocation7], %s219
          %s221 = sshll.u32 [#allocation6], 4
          %s222 = int_to_ptr.vmem [resolvable:$true] %s221
          %227 = dma.hbm_to_vmem [thread:$0]  %s1, 1024, %s222, [#allocation7], 64, 64, 4
        $region16: #{tpu_custom_call.1} parent=11 // pred_fallthru
          _
        // Predicated region
        $region17: #{tpu_custom_call.1} parent=11 // pred_check
          %p228 = pneg %p90
        $region18: #{tpu_custom_call.1} parent=11 // pred_check_branch
          %230 = sbr.rel (%p228) target = $region20
        $region19: #{tpu_custom_call.1} parent=11 // pred_region
          _
        $region20: #{tpu_custom_call.1} parent=11 // pred_fallthru
          _
        // Predicated region
        $region21: #{tpu_custom_call.1} parent=11 // pred_check
          %p231 = pneg %p111
        $region22: #{tpu_custom_call.1} parent=11 // pred_check_branch
          %233 = sbr.rel (%p231) target = $region24
        $region23: #{tpu_custom_call.1} parent=11 // pred_region
          %s235 = ssub.s32 1024, 1024
          %236 = vsyncadd [#allocation7], %s235
          %s237 = sshll.u32 [#allocation8], 4
          %s238 = int_to_ptr.vmem [resolvable:$true] %s237
          %243 = dma.hbm_to_vmem [thread:$0]  %s3, 1024, %s238, [#allocation7], 64, 64, 4
        $region24: #{tpu_custom_call.1} parent=11 // pred_fallthru
          _
        // Predicated region
        $region25: #{tpu_custom_call.1} parent=11 // pred_check
          %p244 = pneg %p132
        $region26: #{tpu_custom_call.1} parent=11 // pred_check_branch
          %246 = sbr.rel (%p244) target = $region28
        $region27: #{tpu_custom_call.1} parent=11 // pred_region
          _
        $region28: #{tpu_custom_call.1} parent=11 // pred_fallthru
          _
        // Predicated region
        $region29: #{tpu_custom_call.1} parent=11 // pred_check
          %p247 = pneg %p153
        $region30: #{tpu_custom_call.1} parent=11 // pred_check_branch
          %249 = sbr.rel (%p247) target = $region32
        $region31: #{tpu_custom_call.1} parent=11 // pred_region
          _
        $region32: #{tpu_custom_call.1} parent=11 // pred_fallthru
          _
        // Predicated region
        $region33: #{tpu_custom_call.1} parent=11 // pred_check
          %p250 = pneg %p174
        $region34: #{tpu_custom_call.1} parent=11 // pred_check_branch
          %252 = sbr.rel (%p250) target = $region36
        $region35: #{tpu_custom_call.1} parent=11 // pred_region
          _
        $region36: #{tpu_custom_call.1} parent=11 // pred_fallthru
          _
      $region12: #{tpu_custom_call.1} parent=5 // pred_fallthru
        _
      %p253 = scmp.lt.s32.totalorder %s22, 2
      // Predicated region
      $region37: #{tpu_custom_call.1} parent=5 // pred_check
        %p254 = pneg %p253
      $region38: #{tpu_custom_call.1} parent=5 // pred_check_branch
        %256 = sbr.rel (%p254) target = $region40
      $region39: #{tpu_custom_call.1} parent=5 // pred_region
        // Predicated region
        $region41: #{tpu_custom_call.1} parent=39 // pred_check
          %p257 = pneg %p42
        $region42: #{tpu_custom_call.1} parent=39 // pred_check_branch
          %259 = sbr.rel (%p257) target = $region44
        $region43: #{tpu_custom_call.1} parent=39 // pred_region
          %s260 = sand.u32 %s32, 1
          %s261 = scalar_lea.sflag [#allocation4], %s260
          %s262 = sand.u32 %s32, 1
          %s263 = smul.addr %s262, 64
          %s264 = scalar_lea.vmem [#allocation3], %s263
          %s265 = smul.u32 16, %s22
          %s267 = ssub.s32 1024, 1024
          %268 = vsyncadd %s261, %s267
          %s269 = smul.addr %s265, 64
          %s270 = scalar_lea.hbm %s0, %s269
          %s271 = sshll.u32 %s264, 4
          %s272 = int_to_ptr.vmem [resolvable:$true] %s271
          %277 = dma.hbm_to_vmem [thread:$0]  %s270, 1024, %s272, %s261, 64, 64, 4
        $region44: #{tpu_custom_call.1} parent=39 // pred_fallthru
          _
      $region40: #{tpu_custom_call.1} parent=5 // pred_fallthru
        _
      %p278 = scmp.le.s32.totalorder 1, %s22
      %p279 = scmp.lt.s32.totalorder %s22, 3
      %p280 = pnand %p278, %p279
      %p281 = pneg %p280
      // Predicated region
      $region45: #{tpu_custom_call.1} parent=5 // pred_check
        _
      $region46: #{tpu_custom_call.1} parent=5 // pred_check_branch
        %283 = sbr.rel (%p280) target = $region48
      $region47: #{tpu_custom_call.1} parent=5 // pred_region
        %s284 = ssub.s32 %s22, 1
        %s285 = sand.u32 %s35, 1
        %s286 = scalar_lea.sflag [#allocation4], %s285
        %s287 = sand.u32 %s35, 1
        %s288 = smul.addr %s287, 64
        %s289 = scalar_lea.vmem [#allocation3], %s288
        // Predicated region
        $region49: #{tpu_custom_call.1} parent=47 // pred_check
          %p290 = pneg %p48
        $region50: #{tpu_custom_call.1} parent=47 // pred_check_branch
          %292 = sbr.rel (%p290) target = $region52
        $region51: #{tpu_custom_call.1} parent=47 // pred_region
          %293 = dma.done %s286, 1024
        $region52: #{tpu_custom_call.1} parent=47 // pred_fallthru
          _
        // Predicated region
        $region53: #{tpu_custom_call.1} parent=47 // pred_check
          %p294 = pneg %p69
        $region54: #{tpu_custom_call.1} parent=47 // pred_check_branch
          %296 = sbr.rel (%p294) target = $region56
        $region55: #{tpu_custom_call.1} parent=47 // pred_region
          %297 = dma.done [#allocation7], 1024
        $region56: #{tpu_custom_call.1} parent=47 // pred_fallthru
          _
        // Predicated region
        $region57: #{tpu_custom_call.1} parent=47 // pred_check
          %p298 = pneg %p111
        $region58: #{tpu_custom_call.1} parent=47 // pred_check_branch
          %300 = sbr.rel (%p298) target = $region60
        $region59: #{tpu_custom_call.1} parent=47 // pred_region
          %301 = dma.done [#allocation7], 1024
        $region60: #{tpu_custom_call.1} parent=47 // pred_fallthru
          _
        %s302 = sand.u32 %s35, 1
        %s303 = scalar_lea.sflag [#allocation4], %s302
        %s304 = sand.u32 %s35, 1
        %s305 = smul.addr %s304, 64
        %s306 = scalar_lea.vmem [#allocation3], %s305
        %p307 = pneg %p48
        %p308 = pneg %p45
        %p309 = pneg %p69
        %p310 = pneg %p66
        %p311 = pneg %p90
        %p312 = pneg %p87
        %p313 = pneg %p111
        %p314 = pneg %p108
        %p315 = pneg %p132
        %p316 = pneg %p129
        %p317 = pneg %p153
        %p318 = pneg %p150
        %p319 = pneg %p174
        %p320 = pneg %p171
        %p321 = pneg %p200
        %p322 = pneg %p197
        %s323 = sand.u32 %s187, 1
        %s324 = scalar_lea.sflag [#allocation5], %s323
        %s325 = sand.u32 %s187, 1
        %s326 = scalar_lea.vmem [#allocation9], %s325
        %s327 = smul.u32 16, %s27
        %v329 = vld [vmem:[%s289] sm:$0xf]
        %v330 = vld [vmem:[%s289 + $0x4] sm:$0xf]
        %v331 = vld [vmem:[%s289 + $0x8] sm:$0xf]
        %v332 = vld [vmem:[%s289 + $0xc] sm:$0xf]
        %v333 = vld [vmem:[%s289 + $0x10] sm:$0xf]
        %v334 = vld [vmem:[%s289 + $0x14] sm:$0xf]
        %v335 = vld [vmem:[%s289 + $0x18] sm:$0xf]
        %v336 = vld [vmem:[%s289 + $0x1c] sm:$0xf]
        %v337 = vld [vmem:[%s289 + $0x20] sm:$0xf]
        %v338 = vld [vmem:[%s289 + $0x24] sm:$0xf]
        %v339 = vld [vmem:[%s289 + $0x28] sm:$0xf]
        %v340 = vld [vmem:[%s289 + $0x2c] sm:$0xf]
        %v341 = vld [vmem:[%s289 + $0x30] sm:$0xf]
        %v342 = vld [vmem:[%s289 + $0x34] sm:$0xf]
        %v343 = vld [vmem:[%s289 + $0x38] sm:$0xf]
        %v344 = vld [vmem:[%s289 + $0x3c] sm:$0xf]
        %v345 = vld [vmem:[#allocation6] sm:$0xf]
        %v346 = vld [vmem:[#allocation6 + $0x4] sm:$0xf]
        %v347 = vld [vmem:[#allocation6 + $0x8] sm:$0xf]
        %v348 = vld [vmem:[#allocation6 + $0xc] sm:$0xf]
        %v349 = vld [vmem:[#allocation6 + $0x10] sm:$0xf]
        %v350 = vld [vmem:[#allocation6 + $0x14] sm:$0xf]
        %v351 = vld [vmem:[#allocation6 + $0x18] sm:$0xf]
        %v352 = vld [vmem:[#allocation6 + $0x1c] sm:$0xf]
        %v353 = vld [vmem:[#allocation6 + $0x20] sm:$0xf]
        %v354 = vld [vmem:[#allocation6 + $0x24] sm:$0xf]
        %v355 = vld [vmem:[#allocation6 + $0x28] sm:$0xf]
        %v356 = vld [vmem:[#allocation6 + $0x2c] sm:$0xf]
        %v357 = vld [vmem:[#allocation6 + $0x30] sm:$0xf]
        %v358 = vld [vmem:[#allocation6 + $0x34] sm:$0xf]
        %v359 = vld [vmem:[#allocation6 + $0x38] sm:$0xf]
        %v360 = vld [vmem:[#allocation6 + $0x3c] sm:$0xf]
        %v361 = vld [vmem:[%s2] sm:$0x1]
        %v363 = vlaneseq
        %v364 = vshrl.u32 %v363, 7
        %v365 = vsub.s32 0, %v364
        %v366 = vrot.slane %v361, %v365
        %v384 = vunpack.c.l.b16 %v329
        %v385 = vunpack.c.l.b16 %v330
        %v386 = vunpack.c.l.b16 %v331
        %v387 = vunpack.c.l.b16 %v332
        %v388 = vunpack.c.l.b16 %v333
        %v389 = vunpack.c.l.b16 %v334
        %v390 = vunpack.c.l.b16 %v335
        %v391 = vunpack.c.l.b16 %v336
        %v392 = vunpack.c.l.b16 %v337
        %v393 = vunpack.c.l.b16 %v338
        %v394 = vunpack.c.l.b16 %v339
        %v395 = vunpack.c.l.b16 %v340
        %v396 = vunpack.c.l.b16 %v341
        %v397 = vunpack.c.l.b16 %v342
        %v398 = vunpack.c.l.b16 %v343
        %v399 = vunpack.c.l.b16 %v344
        %v400 = vpack.c.b16 %v385, %v384
        %v401 = vpack.c.b16 %v387, %v386
        %v402 = vpack.c.b16 %v389, %v388
        %v403 = vpack.c.b16 %v391, %v390
        %v404 = vpack.c.b16 %v393, %v392
        %v405 = vpack.c.b16 %v395, %v394
        %v406 = vpack.c.b16 %v397, %v396
        %v407 = vpack.c.b16 %v399, %v398
        %v432 = vunpack.c.l.b16 %v345
        %v433 = vunpack.c.l.b16 %v346
        %v434 = vunpack.c.l.b16 %v347
        %v435 = vunpack.c.l.b16 %v348
        %v436 = vunpack.c.l.b16 %v349
        %v437 = vunpack.c.l.b16 %v350
        %v438 = vunpack.c.l.b16 %v351
        %v439 = vunpack.c.l.b16 %v352
        %v440 = vunpack.c.l.b16 %v353
        %v441 = vunpack.c.l.b16 %v354
        %v442 = vunpack.c.l.b16 %v355
        %v443 = vunpack.c.l.b16 %v356
        %v444 = vunpack.c.l.b16 %v357
        %v445 = vunpack.c.l.b16 %v358
        %v446 = vunpack.c.l.b16 %v359
        %v447 = vunpack.c.l.b16 %v360
        %v448 = vpack.c.b16 %v433, %v432
        %v449 = vpack.c.b16 %v435, %v434
        %v450 = vpack.c.b16 %v437, %v436
        %v451 = vpack.c.b16 %v439, %v438
        %v452 = vpack.c.b16 %v441, %v440
        %v453 = vpack.c.b16 %v443, %v442
        %v454 = vpack.c.b16 %v445, %v444
        %v455 = vpack.c.b16 %v447, %v446
        %464 = vmatprep.subr.bf16.mxu0 0
        %465 = vmatpush1.bf16.msra.mxu0 %v455
        %466 = vmatprep.subr.bf16.mxu0 0
        %467 = vmatpush1.bf16.msra.mxu0 %v454
        %468 = vmatprep.subr.bf16.mxu0 0
        %469 = vmatpush1.bf16.msra.mxu0 %v453
        %470 = vmatprep.subr.bf16.mxu0 0
        %471 = vmatpush1.bf16.msra.mxu0 %v452
        %472 = vmatprep.subr.bf16.mxu0 0
        %473 = vmatpush1.bf16.msra.mxu0 %v451
        %474 = vmatprep.subr.bf16.mxu0 0
        %475 = vmatpush1.bf16.msra.mxu0 %v450
        %476 = vmatprep.subr.bf16.mxu0 0
        %477 = vmatpush1.bf16.msra.mxu0 %v449
        %478 = vmatprep.subr.bf16.mxu0 0
        %479 = vmatpush1.bf16.msra.mxu0 %v448
        %480 = vmatprep.subr.bf16.mxu0 0
        %481 = vmatpush2.bf16.msra.mxu0 0
        %482 = vmatprep.subr.bf16.mxu0 0
        %483 = vmatpush2.bf16.msra.mxu0 0
        %484 = vmatprep.subr.bf16.mxu0 0
        %485 = vmatpush2.bf16.msra.mxu0 0
        %486 = vmatprep.subr.bf16.mxu0 0
        %487 = vmatpush2.bf16.msra.mxu0 0
        %488 = vmatprep.subr.bf16.mxu0 0
        %489 = vmatpush2.bf16.msra.mxu0 0
        %490 = vmatprep.subr.bf16.mxu0 0
        %491 = vmatpush2.bf16.msra.mxu0 0
        %492 = vmatprep.subr.bf16.mxu0 0
        %493 = vmatpush2.bf16.msra.mxu0 0
        %494 = vmatprep.subr.bf16.mxu0 0
        %495 = vmatpush2.bf16.msra.mxu0 0
        %496 = vmatprep.mubr.bf16.mxu0 0
        %497 = vmatmul.mubr.bf16.gmra.mxu0 %v400
        %v498 = vpop.f32.mrf.mxu0
        %v499 = vadd.f32 %v366, %v498
        %v500 = vpop.f32.mrf.mxu0
        %v501 = vpop.f32.mrf.mxu0
        %v502 = vadd.f32 %v366, %v501
        %v503 = vpop.f32.mrf.mxu0
        %504 = vmatprep.mubr.bf16.mxu0 0
        %505 = vmatmul.mubr.bf16.gmra.mxu0 %v401
        %v506 = vpop.f32.mrf.mxu0
        %v507 = vadd.f32 %v366, %v506
        %v508 = vpop.f32.mrf.mxu0
        %v509 = vpop.f32.mrf.mxu0
        %v510 = vadd.f32 %v366, %v509
        %v511 = vpop.f32.mrf.mxu0
        %512 = vmatprep.mubr.bf16.mxu0 0
        %513 = vmatmul.mubr.bf16.gmra.mxu0 %v402
        %v514 = vpop.f32.mrf.mxu0
        %v515 = vadd.f32 %v366, %v514
        %v516 = vpop.f32.mrf.mxu0
        %v517 = vpop.f32.mrf.mxu0
        %v518 = vadd.f32 %v366, %v517
        %v519 = vpop.f32.mrf.mxu0
        %520 = vmatprep.mubr.bf16.mxu0 0
        %521 = vmatmul.mubr.bf16.gmra.mxu0 %v403
        %v522 = vpop.f32.mrf.mxu0
        %v523 = vadd.f32 %v366, %v522
        %v524 = vpop.f32.mrf.mxu0
        %v525 = vpop.f32.mrf.mxu0
        %v526 = vadd.f32 %v366, %v525
        %v527 = vpop.f32.mrf.mxu0
        %528 = vmatprep.mubr.bf16.mxu0 0
        %529 = vmatmul.mubr.bf16.gmra.mxu0 %v404
        %v530 = vpop.f32.mrf.mxu0
        %v531 = vadd.f32 %v366, %v530
        %v532 = vpop.f32.mrf.mxu0
        %v533 = vpop.f32.mrf.mxu0
        %v534 = vadd.f32 %v366, %v533
        %v535 = vpop.f32.mrf.mxu0
        %536 = vmatprep.mubr.bf16.mxu0 0
        %537 = vmatmul.mubr.bf16.gmra.mxu0 %v405
        %v538 = vpop.f32.mrf.mxu0
        %v539 = vadd.f32 %v366, %v538
        %v540 = vpop.f32.mrf.mxu0
        %v541 = vpop.f32.mrf.mxu0
        %v542 = vadd.f32 %v366, %v541
        %v543 = vpop.f32.mrf.mxu0
        %544 = vmatprep.mubr.bf16.mxu0 0
        %545 = vmatmul.mubr.bf16.gmra.mxu0 %v406
        %v546 = vpop.f32.mrf.mxu0
        %v547 = vadd.f32 %v366, %v546
        %v548 = vpop.f32.mrf.mxu0
        %v549 = vpop.f32.mrf.mxu0
        %v550 = vadd.f32 %v366, %v549
        %v551 = vpop.f32.mrf.mxu0
        %552 = vmatprep.mubr.bf16.mxu0 0
        %553 = vmatmul.mubr.bf16.gmra.mxu0 %v407
        %v554 = vpop.f32.mrf.mxu0
        %v555 = vadd.f32 %v366, %v554
        %v556 = vpop.f32.mrf.mxu0
        %v557 = vpop.f32.mrf.mxu0
        %v558 = vadd.f32 %v366, %v557
        %v559 = vpop.f32.mrf.mxu0
        %560 = vdwg.mxu0
        %v561 = vmax.f32 %v499, 0.0
        %v562 = vmax.f32 %v502, 0.0
        %v563 = vmax.f32 %v507, 0.0
        %v564 = vmax.f32 %v510, 0.0
        %v565 = vmax.f32 %v515, 0.0
        %v566 = vmax.f32 %v518, 0.0
        %v567 = vmax.f32 %v523, 0.0
        %v568 = vmax.f32 %v526, 0.0
        %v569 = vmax.f32 %v531, 0.0
        %v570 = vmax.f32 %v534, 0.0
        %v571 = vmax.f32 %v539, 0.0
        %v572 = vmax.f32 %v542, 0.0
        %v573 = vmax.f32 %v547, 0.0
        %v574 = vmax.f32 %v550, 0.0
        %v575 = vmax.f32 %v555, 0.0
        %v576 = vmax.f32 %v558, 0.0
        %v577 = vpack.c.bf16 %v562, %v561
        %v578 = vpack.c.bf16 %v564, %v563
        %v579 = vpack.c.bf16 %v566, %v565
        %v580 = vpack.c.bf16 %v568, %v567
        %v581 = vpack.c.bf16 %v570, %v569
        %v582 = vpack.c.bf16 %v572, %v571
        %v583 = vpack.c.bf16 %v574, %v573
        %v584 = vpack.c.bf16 %v576, %v575
        %v585 = vld [vmem:[#allocation8] sm:$0xf]
        %v586 = vld [vmem:[#allocation8 + $0x4] sm:$0xf]
        %v587 = vld [vmem:[#allocation8 + $0x8] sm:$0xf]
        %v588 = vld [vmem:[#allocation8 + $0xc] sm:$0xf]
        %v589 = vld [vmem:[#allocation8 + $0x10] sm:$0xf]
        %v590 = vld [vmem:[#allocation8 + $0x14] sm:$0xf]
        %v591 = vld [vmem:[#allocation8 + $0x18] sm:$0xf]
        %v592 = vld [vmem:[#allocation8 + $0x1c] sm:$0xf]
        %v593 = vld [vmem:[#allocation8 + $0x20] sm:$0xf]
        %v594 = vld [vmem:[#allocation8 + $0x24] sm:$0xf]
        %v595 = vld [vmem:[#allocation8 + $0x28] sm:$0xf]
        %v596 = vld [vmem:[#allocation8 + $0x2c] sm:$0xf]
        %v597 = vld [vmem:[#allocation8 + $0x30] sm:$0xf]
        %v598 = vld [vmem:[#allocation8 + $0x34] sm:$0xf]
        %v599 = vld [vmem:[#allocation8 + $0x38] sm:$0xf]
        %v600 = vld [vmem:[#allocation8 + $0x3c] sm:$0xf]
        %v601 = vld [vmem:[%s4] sm:$0x1]
        %v603 = vlaneseq
        %v604 = vshrl.u32 %v603, 7
        %v605 = vsub.s32 0, %v604
        %v606 = vrot.slane %v601, %v605
        %v624 = vunpack.c.l.b16 %v585
        %v625 = vunpack.c.l.b16 %v586
        %v626 = vunpack.c.l.b16 %v587
        %v627 = vunpack.c.l.b16 %v588
        %v628 = vunpack.c.l.b16 %v589
        %v629 = vunpack.c.l.b16 %v590
        %v630 = vunpack.c.l.b16 %v591
        %v631 = vunpack.c.l.b16 %v592
        %v632 = vunpack.c.l.b16 %v593
        %v633 = vunpack.c.l.b16 %v594
        %v634 = vunpack.c.l.b16 %v595
        %v635 = vunpack.c.l.b16 %v596
        %v636 = vunpack.c.l.b16 %v597
        %v637 = vunpack.c.l.b16 %v598
        %v638 = vunpack.c.l.b16 %v599
        %v639 = vunpack.c.l.b16 %v600
        %v640 = vpack.c.b16 %v625, %v624
        %v641 = vpack.c.b16 %v627, %v626
        %v642 = vpack.c.b16 %v629, %v628
        %v643 = vpack.c.b16 %v631, %v630
        %v644 = vpack.c.b16 %v633, %v632
        %v645 = vpack.c.b16 %v635, %v634
        %v646 = vpack.c.b16 %v637, %v636
        %v647 = vpack.c.b16 %v639, %v638
        %656 = vmatprep.subr.bf16.mxu0 0
        %657 = vmatpush1.bf16.msra.mxu0 %v647
        %658 = vmatprep.subr.bf16.mxu0 0
        %659 = vmatpush1.bf16.msra.mxu0 %v646
        %660 = vmatprep.subr.bf16.mxu0 0
        %661 = vmatpush1.bf16.msra.mxu0 %v645
        %662 = vmatprep.subr.bf16.mxu0 0
        %663 = vmatpush1.bf16.msra.mxu0 %v644
        %664 = vmatprep.subr.bf16.mxu0 0
        %665 = vmatpush1.bf16.msra.mxu0 %v643
        %666 = vmatprep.subr.bf16.mxu0 0
        %667 = vmatpush1.bf16.msra.mxu0 %v642
        %668 = vmatprep.subr.bf16.mxu0 0
        %669 = vmatpush1.bf16.msra.mxu0 %v641
        %670 = vmatprep.subr.bf16.mxu0 0
        %671 = vmatpush1.bf16.msra.mxu0 %v640
        %672 = vmatprep.subr.bf16.mxu0 0
        %673 = vmatpush2.bf16.msra.mxu0 0
        %674 = vmatprep.subr.bf16.mxu0 0
        %675 = vmatpush2.bf16.msra.mxu0 0
        %676 = vmatprep.subr.bf16.mxu0 0
        %677 = vmatpush2.bf16.msra.mxu0 0
        %678 = vmatprep.subr.bf16.mxu0 0
        %679 = vmatpush2.bf16.msra.mxu0 0
        %680 = vmatprep.subr.bf16.mxu0 0
        %681 = vmatpush2.bf16.msra.mxu0 0
        %682 = vmatprep.subr.bf16.mxu0 0
        %683 = vmatpush2.bf16.msra.mxu0 0
        %684 = vmatprep.subr.bf16.mxu0 0
        %685 = vmatpush2.bf16.msra.mxu0 0
        %686 = vmatprep.subr.bf16.mxu0 0
        %687 = vmatpush2.bf16.msra.mxu0 0
        %688 = vmatprep.mubr.bf16.mxu0 0
        %689 = vmatmul.mubr.bf16.gmra.mxu0 %v577
        %v690 = vpop.f32.mrf.mxu0
        %v691 = vadd.f32 %v606, %v690
        %v692 = vpop.f32.mrf.mxu0
        %v693 = vpop.f32.mrf.mxu0
        %v694 = vadd.f32 %v606, %v693
        %v695 = vpop.f32.mrf.mxu0
        %696 = vmatprep.mubr.bf16.mxu0 0
        %697 = vmatmul.mubr.bf16.gmra.mxu0 %v578
        %v698 = vpop.f32.mrf.mxu0
        %v699 = vadd.f32 %v606, %v698
        %v700 = vpop.f32.mrf.mxu0
        %v701 = vpop.f32.mrf.mxu0
        %v702 = vadd.f32 %v606, %v701
        %v703 = vpop.f32.mrf.mxu0
        %704 = vmatprep.mubr.bf16.mxu0 0
        %705 = vmatmul.mubr.bf16.gmra.mxu0 %v579
        %v706 = vpop.f32.mrf.mxu0
        %v707 = vadd.f32 %v606, %v706
        %v708 = vpop.f32.mrf.mxu0
        %v709 = vpop.f32.mrf.mxu0
        %v710 = vadd.f32 %v606, %v709
        %v711 = vpop.f32.mrf.mxu0
        %712 = vmatprep.mubr.bf16.mxu0 0
        %713 = vmatmul.mubr.bf16.gmra.mxu0 %v580
        %v714 = vpop.f32.mrf.mxu0
        %v715 = vadd.f32 %v606, %v714
        %v716 = vpop.f32.mrf.mxu0
        %v717 = vpop.f32.mrf.mxu0
        %v718 = vadd.f32 %v606, %v717
        %v719 = vpop.f32.mrf.mxu0
        %720 = vmatprep.mubr.bf16.mxu0 0
        %721 = vmatmul.mubr.bf16.gmra.mxu0 %v581
        %v722 = vpop.f32.mrf.mxu0
        %v723 = vadd.f32 %v606, %v722
        %v724 = vpop.f32.mrf.mxu0
        %v725 = vpop.f32.mrf.mxu0
        %v726 = vadd.f32 %v606, %v725
        %v727 = vpop.f32.mrf.mxu0
        %728 = vmatprep.mubr.bf16.mxu0 0
        %729 = vmatmul.mubr.bf16.gmra.mxu0 %v582
        %v730 = vpop.f32.mrf.mxu0
        %v731 = vadd.f32 %v606, %v730
        %v732 = vpop.f32.mrf.mxu0
        %v733 = vpop.f32.mrf.mxu0
        %v734 = vadd.f32 %v606, %v733
        %v735 = vpop.f32.mrf.mxu0
        %736 = vmatprep.mubr.bf16.mxu0 0
        %737 = vmatmul.mubr.bf16.gmra.mxu0 %v583
        %v738 = vpop.f32.mrf.mxu0
        %v739 = vadd.f32 %v606, %v738
        %v740 = vpop.f32.mrf.mxu0
        %v741 = vpop.f32.mrf.mxu0
        %v742 = vadd.f32 %v606, %v741
        %v743 = vpop.f32.mrf.mxu0
        %744 = vmatprep.mubr.bf16.mxu0 0
        %745 = vmatmul.mubr.bf16.gmra.mxu0 %v584
        %v746 = vpop.f32.mrf.mxu0
        %v747 = vadd.f32 %v606, %v746
        %v748 = vpop.f32.mrf.mxu0
        %v749 = vpop.f32.mrf.mxu0
        %v750 = vadd.f32 %v606, %v749
        %v751 = vpop.f32.mrf.mxu0
        %752 = vdwg.mxu0
        %v753 = vmax.f32 %v691, 0.0
        %v754 = vmax.f32 %v694, 0.0
        %v755 = vmax.f32 %v699, 0.0
        %v756 = vmax.f32 %v702, 0.0
        %v757 = vmax.f32 %v707, 0.0
        %v758 = vmax.f32 %v710, 0.0
        %v759 = vmax.f32 %v715, 0.0
        %v760 = vmax.f32 %v718, 0.0
        %v761 = vmax.f32 %v723, 0.0
        %v762 = vmax.f32 %v726, 0.0
        %v763 = vmax.f32 %v731, 0.0
        %v764 = vmax.f32 %v734, 0.0
        %v765 = vmax.f32 %v739, 0.0
        %v766 = vmax.f32 %v742, 0.0
        %v767 = vmax.f32 %v747, 0.0
        %v768 = vmax.f32 %v750, 0.0
        %v769 = vpack.c.bf16 %v754, %v753
        %v770 = vpack.c.bf16 %v756, %v755
        %v771 = vpack.c.bf16 %v758, %v757
        %v772 = vpack.c.bf16 %v760, %v759
        %v773 = vpack.c.bf16 %v762, %v761
        %v774 = vpack.c.bf16 %v764, %v763
        %v775 = vpack.c.bf16 %v766, %v765
        %v776 = vpack.c.bf16 %v768, %v767
        %v777 = vld [vmem:[%s5] sm:$0xf]
        %778 = vmatprep.subr.bf16.mxu0 0
        %779 = vmatpush1.bf16.xpose.msra.mxu0 %v776
        %780 = vmatprep.subr.bf16.mxu0 0
        %781 = vmatpush1.bf16.xpose.msra.mxu0 %v775
        %782 = vmatprep.subr.bf16.mxu0 0
        %783 = vmatpush1.bf16.xpose.msra.mxu0 %v774
        %784 = vmatprep.subr.bf16.mxu0 0
        %785 = vmatpush1.bf16.xpose.msra.mxu0 %v773
        %786 = vmatprep.subr.bf16.mxu0 0
        %787 = vmatpush1.bf16.xpose.msra.mxu0 %v772
        %788 = vmatprep.subr.bf16.mxu0 0
        %789 = vmatpush1.bf16.xpose.msra.mxu0 %v771
        %790 = vmatprep.subr.bf16.mxu0 0
        %791 = vmatpush1.bf16.xpose.msra.mxu0 %v770
        %792 = vmatprep.subr.bf16.mxu0 0
        %793 = vmatpush1.bf16.xpose.msra.mxu0 %v769
        %794 = vmatprep.subr.bf16.mxu0 0
        %795 = vmatpush2.bf16.xpose.msra.mxu0 0
        %796 = vmatprep.subr.bf16.mxu0 0
        %797 = vmatpush2.bf16.xpose.msra.mxu0 0
        %798 = vmatprep.subr.bf16.mxu0 0
        %799 = vmatpush2.bf16.xpose.msra.mxu0 0
        %800 = vmatprep.subr.bf16.mxu0 0
        %801 = vmatpush2.bf16.xpose.msra.mxu0 0
        %802 = vmatprep.subr.bf16.mxu0 0
        %803 = vmatpush2.bf16.xpose.msra.mxu0 0
        %804 = vmatprep.subr.bf16.mxu0 0
        %805 = vmatpush2.bf16.xpose.msra.mxu0 0
        %806 = vmatprep.subr.bf16.mxu0 0
        %807 = vmatpush2.bf16.xpose.msra.mxu0 0
        %808 = vmatprep.subr.bf16.mxu0 0
        %809 = vmatpush2.bf16.xpose.msra.mxu0 0
        %810 = vmatprep.mubr.bf16.mxu0 0
        %811 = vmatmul.mubr.bf16.gmra.mxu0 %v777
        %v812 = vpop.f32.mrf.mxu0
        %v813 = vadd.f32 0.0, %v812
        %v814 = vpop.f32.mrf.mxu0
        %v815 = vpop.f32.mrf.mxu0
        %v816 = vpop.f32.mrf.mxu0
        %817 = vdwg.mxu0
        %v818 = vld [vmem:[#allocation2] sm:$0x1]
        %820 = vset.pattern.permute.xlu0 0
        %821 = vperm.xlu0 %820, %v818
        %v822 = vpop.permute.xlu0 %821
        %v824 = vlaneseq
        %v825 = vshrl.u32 %v824, 7
        %v826 = vsub.s32 0, %v825
        %v827 = vrot.slane %v822, %v826
        %v828 = vadd.f32 %v813, %v827
        %v829 = vxor.u32 %v828, 2147483648
        %v830 = vmul.f32 %v829, 1.442695
        %v831 = vpow.pop %v830
        %v832 = vadd.f32 %v831, 1.0
        %v833 = vrcp.pop %v832
        %v834 = vmul.f32 1.0, %v833
        %835 = vst [vmem:[%s326] sm:$0x1] %v834
        %s836 = sand.u32 %s187, 1
        %s837 = scalar_lea.sflag [#allocation5], %s836
        %s838 = sand.u32 %s187, 1
        %s839 = scalar_lea.vmem [#allocation9], %s838
        // Predicated region
        $region61: #{tpu_custom_call.1} parent=47 // pred_check
          %p840 = pneg %p197
        $region62: #{tpu_custom_call.1} parent=47 // pred_check_branch
          %842 = sbr.rel (%p840) target = $region64
        $region63: #{tpu_custom_call.1} parent=47 // pred_region
          %s844 = ssub.s32 16, 16
          %845 = vsyncadd %s837, %s844
          %s846 = smul.addr %s27, 16
          %s847 = scalar_lea.hbm %s7, %s846
          %s849 = sshll.u32 %s839, 4
          %s850 = int_to_ptr.vmem [resolvable:$true] %s849
          %852 = dma.vmem_to_hbm [thread:$0]  %s850, 16, %s847, %s837
        $region64: #{tpu_custom_call.1} parent=47 // pred_fallthru
          _
      $region48: #{tpu_custom_call.1} parent=5 // pred_fallthru
        _
      %p853 = scmp.le.s32.totalorder 2, %s22
      // Predicated region
      $region65: #{tpu_custom_call.1} parent=5 // pred_check
        %p854 = pneg %p853
      $region66: #{tpu_custom_call.1} parent=5 // pred_check_branch
        %856 = sbr.rel (%p854) target = $region68
      $region67: #{tpu_custom_call.1} parent=5 // pred_region
        %s857 = ssub.s32 %s22, 2
        // Predicated region
        $region69: #{tpu_custom_call.1} parent=67 // pred_check
          %p858 = pneg %p203
        $region70: #{tpu_custom_call.1} parent=67 // pred_check_branch
          %860 = sbr.rel (%p858) target = $region72
        $region71: #{tpu_custom_call.1} parent=67 // pred_region
          %s861 = sand.u32 %s188, 1
          %s862 = scalar_lea.sflag [#allocation5], %s861
          %s863 = sand.u32 %s188, 1
          %s864 = scalar_lea.vmem [#allocation9], %s863
          %865 = dma.done %s862, 16
        $region72: #{tpu_custom_call.1} parent=67 // pred_fallthru
          _
      $region68: #{tpu_custom_call.1} parent=5 // pred_fallthru
        _
    $region6: #{tpu_custom_call.1} parent=1 // loop_footer
      %s26 = sadd.s32 1, %s22
    $region7: #{tpu_custom_call.1} parent=1 // loop_footer_branch
      %21 = sbr.rel target = $region3
    $region8: #{tpu_custom_call.1} parent=1 // loop_exit
      _
    %866 = vsyncpa [#allocation4], 1
    %s867 = scalar_lea.sflag [#allocation4], 1
    %868 = vsyncpa %s867, 1
    %869 = vsyncpa [#allocation7], 1
    %870 = vsyncpa [#allocation5], 1
    %s871 = scalar_lea.sflag [#allocation5], 1
    %872 = vsyncpa %s871, 1

</llo_original>
